<compile_context>
chip_gen: v7x
topology: tpu7x:2x2x1
jax: 0.10.0
libtpu: 0.0.40
codegen_flags: <defaults>
</compile_context>

<pallas_src>
import functools

import jax
import jax.numpy as jnp
from jax.experimental import pallas as pl
from jax.experimental.pallas import tpu as pltpu

KH = KW = 2  # all three convs are 2x2


def _fused_net_kernel(x_ref, w_ref, o_ref, *, W, HW, N, layer_dims):
    """All three 2x2 convs + biases fused; whole batch in one invocation.

    x_ref: (N, Cin0, HW)   flattened HxW maps, channels on sublanes, HW on lanes
    w_ref: (3, Cout_max, K_max) packed weights; per layer, row-block [:Cout] and
           column-block [:KH*KW*Cin+1] hold the (kh, kw, ci)-ordered taps plus a
           trailing bias column.
    o_ref: (N, Cout_last, HW)
    """
    ones_row = jnp.ones((1, HW), jnp.float32)  # hoisted: feeds the folded bias column
    w_all = w_ref[...]                          # (3, Cout_max, K_max), one tiny load

    def conv2x2(x_flat, w_packed):
        # x_flat: (Cin, HW); w_packed: (Cout, KH*KW*Cin + 1) with bias as last column.
        taps = []
        for kh in range(KH):
            for kw in range(KW):
                s = kh * W + kw                      # flat-index shift of this tap
                t = x_flat if s == 0 else pltpu.roll(x_flat, shift=HW - s, axis=1)
                taps.append(t)                       # shifted[p] = x[p + s] (mod HW)
        patches = jnp.concatenate(taps + [ones_row], axis=0)   # (K, HW) im2col + ones
        return jax.lax.dot_general(                  # one MXU matmul per layer
            w_packed, patches,
            dimension_numbers=(((1,), (0,)), ((), ())),
            preferred_element_type=jnp.float32,
        )                                            # (Cout, HW), lane-dense

    for n in range(N):                               # static unroll over the batch
        h = x_ref[n]                                 # (Cin0, HW)
        for li, (cin, cout) in enumerate(layer_dims):
            k = KH * KW * cin + 1                    # +1 for the folded bias column
            h = conv2x2(h, w_all[li, :cout, :k])     # intermediates never leave vregs
        o_ref[n] = h                                 # full-width (unmasked) stores


def net_conv2d_forward(x_nchw, w_all):
    """Forward of Net_Conv2d. Input/output are NCHW like the PyTorch module."""
    N, Cin, H, W = x_nchw.shape
    assert Cin == 2, "conv1 expects 2 input channels"
    HW = H * W
    layer_dims = ((2, 4), (4, 8), (8, 8))
    n_layers = len(layer_dims)
    Cout = layer_dims[-1][1]
    Hout = H - n_layers * (KH - 1)
    Wout = W - n_layers * (KW - 1)
    # The roll wrap-around / row-bleed garbage only ever lands at rows H-1 / cols W-1
    # of each layer's padded map, which the crop below removes, provided the crop is
    # non-empty and the kernels are 2x2.  Guard that statically.
    assert Hout >= 1 and Wout >= 1, "crop argument requires a non-empty valid region"

    kernel = functools.partial(
        _fused_net_kernel, W=W, HW=HW, N=N, layer_dims=layer_dims)
    x_flat = x_nchw.reshape(N, Cin, HW)              # metadata-only reshape

    out_flat = pl.pallas_call(
        kernel,
        out_shape=jax.ShapeDtypeStruct((N, Cout, HW), jnp.float32),
        grid=(1,),                                   # whole batch in ONE grid step
        in_specs=[
            pl.BlockSpec((N, Cin, HW), lambda i: (0, 0, 0)),
            pl.BlockSpec(w_all.shape, lambda i: (0, 0, 0)),   # single packed param DMA
        ],
        out_specs=pl.BlockSpec((N, Cout, HW), lambda i: (0, 0, 0)),
        compiler_params=pltpu.CompilerParams(dimension_semantics=("arbitrary",)),
    )(x_flat, w_all)

    # Crop the valid region (tiny slice, fused into the same jitted executable).
    return out_flat.reshape(N, Cout, H, W)[:, :, :Hout, :Wout]


def pack_params(params):
    """One-time pre-pack of ALL layers into a single buffer.

    Returns (3, Cout_max, K_max) f32, zero-padded.  Per layer li:
      w_all[li, :Cout, :KH*KW*Cin]  = OIHW weight transposed to (Cout, kh*kw*ci)
      w_all[li, :Cout,  KH*KW*Cin]  = bias (folded into the matmul via a ones row)
    """
    names = ("conv1", "conv2", "conv3")
    cout_max = max(params[n][0].shape[0] for n in names)
    k_max = max(params[n][0].shape[1] * KH * KW + 1 for n in names)
    w_all = jnp.zeros((len(names), cout_max, k_max), jnp.float32)
    for li, name in enumerate(names):
        w, b = params[name]
        cout, cin, kh, kw = w.shape
        assert (kh, kw) == (KH, KW)
        wp = jnp.transpose(w, (0, 2, 3, 1)).reshape(cout, kh * kw * cin)  # (kh,kw,ci)
        wp = jnp.concatenate([wp, b.reshape(cout, 1)], axis=1)            # bias column
        w_all = w_all.at[li, :cout, :kh * kw * cin + 1].set(wp.astype(jnp.float32))
    return w_all


def init_params(key):
    """Deterministic params matching nn.Conv2d(2,4,2), (4,8,2), (8,8,2) (OIHW, bias)."""
    def conv_init(k, cout, cin, kh, kw):
        kw_key, kb_key = jax.random.split(k)
        fan_in = cin * kh * kw
        bound = 1.0 / jnp.sqrt(fan_in)
        w = jax.random.uniform(kw_key, (cout, cin, kh, kw), jnp.float32, -bound, bound)
        b = jax.random.uniform(kb_key, (cout,), jnp.float32, -bound, bound)
        return w, b

    k1, k2, k3 = jax.random.split(key, 3)
    return {
        "conv1": conv_init(k1, 4, 2, 2, 2),
        "conv2": conv_init(k2, 8, 4, 2, 2),
        "conv3": conv_init(k3, 8, 8, 2, 2),
    }


def _reference_forward(x_nchw, params):
    x = x_nchw
    for name in ("conv1", "conv2", "conv3"):
        w, b = params[name]
        x = jax.lax.conv_general_dilated(
            x, w, window_strides=(1, 1), padding="VALID",
            dimension_numbers=("NCHW", "OIHW", "NCHW"),
        ) + b[None, :, None, None]
    return x


if __name__ == "__main__":
    key = jax.random.PRNGKey(0)
    pkey, xkey = jax.random.split(key)
    params = init_params(pkey)
    w_all = pack_params(params)

    # Input: batch=2, in_channels=2 (required by conv1), spatial 16x16.
    x = jax.random.normal(xkey, (2, 2, 16, 16), jnp.float32)

    fwd = jax.jit(net_conv2d_forward)
    out = jax.block_until_ready(fwd(x, w_all))
    ref = jax.block_until_ready(_reference_forward(x, params))

    assert out.shape == (2, 8, 13, 13), out.shape
    assert jnp.allclose(out, ref, rtol=1e-4, atol=1e-4), float(jnp.max(jnp.abs(out - ref)))

    print("KERNEL_OK")
</pallas_src>

<mosaic_0001>
module attributes {stable_mosaic.version = 11 : i64} {
  func.func @_fused_net_kernel(%arg0: i32, %arg1: memref<2x2x256xf32, #tpu.memory_space<vmem>>, %arg2: memref<3x8x33xf32, #tpu.memory_space<vmem>>, %arg3: memref<2x8x256xf32, #tpu.memory_space<vmem>>) attributes {dimension_semantics = [#tpu.dimension_semantics<arbitrary>], iteration_bounds = array<i64: 1>, scalar_prefetch = 0 : i64, scratch_operands = 0 : i64, tpu.core_type = #tpu.core_type<tc>, window_params = [{pipeline_mode = #tpu.pipeline_mode<synchronous>, transform_indices = @transform_0, window_bounds = array<i64: 2, 2, 256>}, {pipeline_mode = #tpu.pipeline_mode<synchronous>, transform_indices = @transform_1, window_bounds = array<i64: 3, 8, 33>}, {pipeline_mode = #tpu.pipeline_mode<synchronous>, transform_indices = @transform_2, window_bounds = array<i64: 2, 8, 256>}]} {
    %cst = arith.constant 1.000000e+00 : f32
    %0 = vector.broadcast %cst : f32 to vector<1x256xf32>
    %c0 = arith.constant 0 : index
    %c0_0 = arith.constant 0 : index
    %c0_1 = arith.constant 0 : index
    %1 = vector.load %arg2[%c0, %c0_0, %c0_1] : memref<3x8x33xf32, #tpu.memory_space<vmem>>, vector<3x8x33xf32>
    %c0_2 = arith.constant 0 : index
    %c0_3 = arith.constant 0 : index
    %c0_4 = arith.constant 0 : index
    %2 = vector.load %arg1[%c0_2, %c0_3, %c0_4] : memref<2x2x256xf32, #tpu.memory_space<vmem>>, vector<1x2x256xf32>
    %3 = vector.shape_cast %2 : vector<1x2x256xf32> to vector<2x256xf32>
    %4 = vector.extract_strided_slice %1 {offsets = [0, 0, 0], sizes = [1, 4, 9], strides = [1, 1, 1]} : vector<3x8x33xf32> to vector<1x4x9xf32>
    %5 = vector.shape_cast %4 : vector<1x4x9xf32> to vector<4x9xf32>
    %c255_i32 = arith.constant 255 : i32
    %6 = tpu.dynamic_rotate %3 by %c255_i32 dim 1 : vector<2x256xf32>, i32 -> vector<2x256xf32>
    %c240_i32 = arith.constant 240 : i32
    %7 = tpu.dynamic_rotate %3 by %c240_i32 dim 1 : vector<2x256xf32>, i32 -> vector<2x256xf32>
    %c239_i32 = arith.constant 239 : i32
    %8 = tpu.dynamic_rotate %3 by %c239_i32 dim 1 : vector<2x256xf32>, i32 -> vector<2x256xf32>
    %9 = tpu.concatenate %3, %6, %7, %8, %0 in 0 : vector<2x256xf32>, vector<2x256xf32>, vector<2x256xf32>, vector<2x256xf32>, vector<1x256xf32> -> vector<9x256xf32>
    %cst_5 = arith.constant dense<0.000000e+00> : vector<4x256xf32>
    %10 = tpu.matmul %5, %9, %cst_5 {dimension_numbers = #tpu.dot_dimension_numbers<[1], [0], [0], [1], [0, 0, 1, 1], [], []>} : vector<4x9xf32>, vector<9x256xf32>, vector<4x256xf32> -> vector<4x256xf32>
    %11 = vector.extract_strided_slice %1 {offsets = [1, 0, 0], sizes = [1, 8, 17], strides = [1, 1, 1]} : vector<3x8x33xf32> to vector<1x8x17xf32>
    %12 = vector.shape_cast %11 : vector<1x8x17xf32> to vector<8x17xf32>
    %c255_i32_6 = arith.constant 255 : i32
    %13 = tpu.dynamic_rotate %10 by %c255_i32_6 dim 1 : vector<4x256xf32>, i32 -> vector<4x256xf32>
    %c240_i32_7 = arith.constant 240 : i32
    %14 = tpu.dynamic_rotate %10 by %c240_i32_7 dim 1 : vector<4x256xf32>, i32 -> vector<4x256xf32>
    %c239_i32_8 = arith.constant 239 : i32
    %15 = tpu.dynamic_rotate %10 by %c239_i32_8 dim 1 : vector<4x256xf32>, i32 -> vector<4x256xf32>
    %16 = tpu.concatenate %10, %13, %14, %15, %0 in 0 : vector<4x256xf32>, vector<4x256xf32>, vector<4x256xf32>, vector<4x256xf32>, vector<1x256xf32> -> vector<17x256xf32>
    %cst_9 = arith.constant dense<0.000000e+00> : vector<8x256xf32>
    %17 = tpu.matmul %12, %16, %cst_9 {dimension_numbers = #tpu.dot_dimension_numbers<[1], [0], [0], [1], [0, 0, 1, 1], [], []>} : vector<8x17xf32>, vector<17x256xf32>, vector<8x256xf32> -> vector<8x256xf32>
    %18 = vector.extract_strided_slice %1 {offsets = [2, 0, 0], sizes = [1, 8, 33], strides = [1, 1, 1]} : vector<3x8x33xf32> to vector<1x8x33xf32>
    %19 = vector.shape_cast %18 : vector<1x8x33xf32> to vector<8x33xf32>
    %c255_i32_10 = arith.constant 255 : i32
    %20 = tpu.dynamic_rotate %17 by %c255_i32_10 dim 1 : vector<8x256xf32>, i32 -> vector<8x256xf32>
    %c240_i32_11 = arith.constant 240 : i32
    %21 = tpu.dynamic_rotate %17 by %c240_i32_11 dim 1 : vector<8x256xf32>, i32 -> vector<8x256xf32>
    %c239_i32_12 = arith.constant 239 : i32
    %22 = tpu.dynamic_rotate %17 by %c239_i32_12 dim 1 : vector<8x256xf32>, i32 -> vector<8x256xf32>
    %23 = tpu.concatenate %17, %20, %21, %22, %0 in 0 : vector<8x256xf32>, vector<8x256xf32>, vector<8x256xf32>, vector<8x256xf32>, vector<1x256xf32> -> vector<33x256xf32>
    %cst_13 = arith.constant dense<0.000000e+00> : vector<8x256xf32>
    %24 = tpu.matmul %19, %23, %cst_13 {dimension_numbers = #tpu.dot_dimension_numbers<[1], [0], [0], [1], [0, 0, 1, 1], [], []>} : vector<8x33xf32>, vector<33x256xf32>, vector<8x256xf32> -> vector<8x256xf32>
    %c0_14 = arith.constant 0 : index
    %c0_15 = arith.constant 0 : index
    %c0_16 = arith.constant 0 : index
    %25 = vector.load %arg3[%c0_14, %c0_15, %c0_16] : memref<2x8x256xf32, #tpu.memory_space<vmem>>, vector<1x8x256xf32>
    %26 = vector.shape_cast %25 : vector<1x8x256xf32> to vector<8x256xf32>
    %27 = vector.shape_cast %24 : vector<8x256xf32> to vector<1x8x256xf32>
    tpu.vector_store %arg3[%c0_14, %c0_15, %c0_16], %27 {strides = array<i32>} : memref<2x8x256xf32, #tpu.memory_space<vmem>>, vector<1x8x256xf32>,
    %c1 = arith.constant 1 : index
    %c0_17 = arith.constant 0 : index
    %c0_18 = arith.constant 0 : index
    %28 = vector.load %arg1[%c1, %c0_17, %c0_18] : memref<2x2x256xf32, #tpu.memory_space<vmem>>, vector<1x2x256xf32>
    %29 = vector.shape_cast %28 : vector<1x2x256xf32> to vector<2x256xf32>
    %30 = vector.extract_strided_slice %1 {offsets = [0, 0, 0], sizes = [1, 4, 9], strides = [1, 1, 1]} : vector<3x8x33xf32> to vector<1x4x9xf32>
    %31 = vector.shape_cast %30 : vector<1x4x9xf32> to vector<4x9xf32>
    %c255_i32_19 = arith.constant 255 : i32
    %32 = tpu.dynamic_rotate %29 by %c255_i32_19 dim 1 : vector<2x256xf32>, i32 -> vector<2x256xf32>
    %c240_i32_20 = arith.constant 240 : i32
    %33 = tpu.dynamic_rotate %29 by %c240_i32_20 dim 1 : vector<2x256xf32>, i32 -> vector<2x256xf32>
    %c239_i32_21 = arith.constant 239 : i32
    %34 = tpu.dynamic_rotate %29 by %c239_i32_21 dim 1 : vector<2x256xf32>, i32 -> vector<2x256xf32>
    %35 = tpu.concatenate %29, %32, %33, %34, %0 in 0 : vector<2x256xf32>, vector<2x256xf32>, vector<2x256xf32>, vector<2x256xf32>, vector<1x256xf32> -> vector<9x256xf32>
    %cst_22 = arith.constant dense<0.000000e+00> : vector<4x256xf32>
    %36 = tpu.matmul %31, %35, %cst_22 {dimension_numbers = #tpu.dot_dimension_numbers<[1], [0], [0], [1], [0, 0, 1, 1], [], []>} : vector<4x9xf32>, vector<9x256xf32>, vector<4x256xf32> -> vector<4x256xf32>
    %37 = vector.extract_strided_slice %1 {offsets = [1, 0, 0], sizes = [1, 8, 17], strides = [1, 1, 1]} : vector<3x8x33xf32> to vector<1x8x17xf32>
    %38 = vector.shape_cast %37 : vector<1x8x17xf32> to vector<8x17xf32>
    %c255_i32_23 = arith.constant 255 : i32
    %39 = tpu.dynamic_rotate %36 by %c255_i32_23 dim 1 : vector<4x256xf32>, i32 -> vector<4x256xf32>
    %c240_i32_24 = arith.constant 240 : i32
    %40 = tpu.dynamic_rotate %36 by %c240_i32_24 dim 1 : vector<4x256xf32>, i32 -> vector<4x256xf32>
    %c239_i32_25 = arith.constant 239 : i32
    %41 = tpu.dynamic_rotate %36 by %c239_i32_25 dim 1 : vector<4x256xf32>, i32 -> vector<4x256xf32>
    %42 = tpu.concatenate %36, %39, %40, %41, %0 in 0 : vector<4x256xf32>, vector<4x256xf32>, vector<4x256xf32>, vector<4x256xf32>, vector<1x256xf32> -> vector<17x256xf32>
    %cst_26 = arith.constant dense<0.000000e+00> : vector<8x256xf32>
    %43 = tpu.matmul %38, %42, %cst_26 {dimension_numbers = #tpu.dot_dimension_numbers<[1], [0], [0], [1], [0, 0, 1, 1], [], []>} : vector<8x17xf32>, vector<17x256xf32>, vector<8x256xf32> -> vector<8x256xf32>
    %44 = vector.extract_strided_slice %1 {offsets = [2, 0, 0], sizes = [1, 8, 33], strides = [1, 1, 1]} : vector<3x8x33xf32> to vector<1x8x33xf32>
    %45 = vector.shape_cast %44 : vector<1x8x33xf32> to vector<8x33xf32>
    %c255_i32_27 = arith.constant 255 : i32
    %46 = tpu.dynamic_rotate %43 by %c255_i32_27 dim 1 : vector<8x256xf32>, i32 -> vector<8x256xf32>
    %c240_i32_28 = arith.constant 240 : i32
    %47 = tpu.dynamic_rotate %43 by %c240_i32_28 dim 1 : vector<8x256xf32>, i32 -> vector<8x256xf32>
    %c239_i32_29 = arith.constant 239 : i32
    %48 = tpu.dynamic_rotate %43 by %c239_i32_29 dim 1 : vector<8x256xf32>, i32 -> vector<8x256xf32>
    %49 = tpu.concatenate %43, %46, %47, %48, %0 in 0 : vector<8x256xf32>, vector<8x256xf32>, vector<8x256xf32>, vector<8x256xf32>, vector<1x256xf32> -> vector<33x256xf32>
    %cst_30 = arith.constant dense<0.000000e+00> : vector<8x256xf32>
    %50 = tpu.matmul %45, %49, %cst_30 {dimension_numbers = #tpu.dot_dimension_numbers<[1], [0], [0], [1], [0, 0, 1, 1], [], []>} : vector<8x33xf32>, vector<33x256xf32>, vector<8x256xf32> -> vector<8x256xf32>
    %c1_31 = arith.constant 1 : index
    %c0_32 = arith.constant 0 : index
    %c0_33 = arith.constant 0 : index
    %51 = vector.load %arg3[%c1_31, %c0_32, %c0_33] : memref<2x8x256xf32, #tpu.memory_space<vmem>>, vector<1x8x256xf32>
    %52 = vector.shape_cast %51 : vector<1x8x256xf32> to vector<8x256xf32>
    %53 = vector.shape_cast %50 : vector<8x256xf32> to vector<1x8x256xf32>
    tpu.vector_store %arg3[%c1_31, %c0_32, %c0_33], %53 {strides = array<i32>} : memref<2x8x256xf32, #tpu.memory_space<vmem>>, vector<1x8x256xf32>,
    return
  }
  func.func @transform_0(%arg0: i32) -> (i32, i32, i32) {
    %c0_i32 = arith.constant 0 : i32
    %c0_i32_0 = arith.constant 0 : i32
    %c0_i32_1 = arith.constant 0 : i32
    %c0_i32_2 = arith.constant 0 : i32
    return %c0_i32, %c0_i32_0, %c0_i32_1 : i32, i32, i32
  }
  func.func @transform_1(%arg0: i32) -> (i32, i32, i32) {
    %c0_i32 = arith.constant 0 : i32
    %c0_i32_0 = arith.constant 0 : i32
    %c0_i32_1 = arith.constant 0 : i32
    %c0_i32_2 = arith.constant 0 : i32
    return %c0_i32, %c0_i32_0, %c0_i32_1 : i32, i32, i32
  }
  func.func @transform_2(%arg0: i32) -> (i32, i32, i32) {
    %c0_i32 = arith.constant 0 : i32
    %c0_i32_0 = arith.constant 0 : i32
    %c0_i32_1 = arith.constant 0 : i32
    %c0_i32_2 = arith.constant 0 : i32
    return %c0_i32, %c0_i32_0, %c0_i32_1 : i32, i32, i32
  }
}

</mosaic_0001>

<llo_original>
// kernel: net_conv2d_forward.1
$region0: #{net_conv2d_forward.1}
  #allocation0 [shape = 'u32[]', space=smem, size = 0x4, offset = 0x4, fixed_abs, tag = 'smem constant byte address 0x4 - core index']
  #allocation1 [shape = 'u32[144,128]{1,0:T(1,128)}', space=vmem, size = 0x12000, scoped, tag = 'internal scratch']
  %s0 = inlined_call_operand.vmem [shape: f32[2,2,256], index: 0, kind: input, shape index: {}]
  %s1 = inlined_call_operand.vmem [shape: f32[3,8,33], index: 1, kind: input, shape index: {}]
  %s2 = inlined_call_operand.vmem [shape: f32[2,8,256], index: 2, kind: output, shape index: {}]
  %s3 = sld [smem:[#allocation0]]
  $region18: #{net_conv2d_forward.1} parent=0
    _
  %s5 = ssub.s32 1, %s3
  %s6 = scalar_select 0, %s5, %s3
  // Predicated region
  $region2: #{net_conv2d_forward.1} parent=0 // pred_check
    _
  $region3: #{net_conv2d_forward.1} parent=0 // pred_check_branch
    %8 = sbr.rel (0) target = $region5
  $region4: #{net_conv2d_forward.1} parent=0 // pred_region
    _
  $region5: #{net_conv2d_forward.1} parent=0 // pred_fallthru
    _
  // Predicated region
  $region6: #{net_conv2d_forward.1} parent=0 // pred_check
    _
  $region7: #{net_conv2d_forward.1} parent=0 // pred_check_branch
    %10 = sbr.rel (0) target = $region9
  $region8: #{net_conv2d_forward.1} parent=0 // pred_region
    _
  $region9: #{net_conv2d_forward.1} parent=0 // pred_fallthru
    _
  %v11 = vld [vmem:[%s1] sm:$0xff]
  %v12 = vld [vmem:[%s1 + $0x8] sm:$0xff]
  %v13 = vld [vmem:[%s1 + $0x10] sm:$0xff]
  %v14 = vld [vmem:[%s0] sm:$0xf]
  %v17 = vunpack.c.l.s4 1983009808
  %v18 = vunpack.c.0.s8 %v17
  %v19 = vlaneseq
  %v20 = vshrl.u32 %v19, 7
  %v21 = vsub.s32 %v18, %v20
  %v22 = vrot.slane %v14, %v21
  %v23 = vcombine.high %v22, %v22
  %26 = vrot.lane.b32.xlu0 %v22, 127
  %v27 = vpop.permute.xlu0 %26
  %28 = vrot.lane.b32.xlu0 %v23, 127
  %v29 = vpop.permute.xlu0 %28
  %v30 = vlaneseq
  %v31 = vand.u32 %v30, 127
  %vm32 = vcmp.lt.s32.totalorder %v31, 127
  %v33 = vsel %vm32, %v27, %v29
  %v34 = vsel %vm32, %v29, %v27
  %35 = vrot.lane.b32.xlu0 %v22, 112
  %v36 = vpop.permute.xlu0 %35
  %37 = vrot.lane.b32.xlu0 %v23, 112
  %v38 = vpop.permute.xlu0 %37
  %vm39 = vcmp.lt.s32.totalorder %v31, 112
  %v40 = vsel %vm39, %v36, %v38
  %v41 = vsel %vm39, %v38, %v36
  %42 = vrot.lane.b32.xlu0 %v22, 111
  %v43 = vpop.permute.xlu0 %42
  %44 = vrot.lane.b32.xlu0 %v23, 111
  %v45 = vpop.permute.xlu0 %44
  %vm46 = vcmp.lt.s32.totalorder %v31, 111
  %v47 = vsel %vm46, %v43, %v45
  %v48 = vsel %vm46, %v45, %v43
  %v51 = vrot.slane %v33, 6
  %v52 = vrot.slane %v34, 6
  %v57 = vrot.slane %v40, 4
  %v58 = vrot.slane %v41, 4
  %v63 = vrot.slane %v47, 2
  %v64 = vrot.slane %v48, 2
  %vm67 = vcmask 1041408
  %v68 = vsel %vm67, %v22, %v51
  %v69 = vsel %vm67, %v23, %v52
  %vm70 = vcmask 1043456
  %v71 = vsel %vm70, %v68, %v57
  %v72 = vsel %vm70, %v69, %v58
  %vm73 = vcmask 1045504
  %v74 = vsel %vm73, %v71, %v63
  %v75 = vsel %vm73, %v72, %v64
  %vm76 = vcmask 72704
  %v78 = vsel %vm76, %v11, 0
  %vm80 = vcmask 1040384
  %v82 = vsel %vm80, 1.0, 0
  %84 = vmatprep.subr.mxu0 %v75
  %85 = vmatpush1.msra.mxu0 %v74
  %86 = vmatprep.subr.mxu0 %v82
  %87 = vmatpush1.msra.mxu0 %v82
  %88 = vmatprep.subr.mxu0 0.0
  %89 = vmatpush1.msra.mxu0 0.0
  %90 = vmatprep.subr.mxu0 0.0
  %91 = vmatpush1.msra.mxu0 0.0
  %92 = vmatprep.subr.mxu0 0.0
  %93 = vmatpush1.msra.mxu0 0.0
  %94 = vmatprep.subr.mxu0 0.0
  %95 = vmatpush1.msra.mxu0 0.0
  %96 = vmatprep.subr.mxu0 0.0
  %97 = vmatpush1.msra.mxu0 0.0
  %98 = vmatprep.subr.mxu0 0.0
  %99 = vmatpush1.msra.mxu0 0.0
  %100 = vmatprep.subr.mxu0 0.0
  %101 = vmatpush1.msra.mxu0 0.0
  %102 = vmatprep.subr.mxu0 0.0
  %103 = vmatpush1.msra.mxu0 0.0
  %104 = vmatprep.subr.mxu0 0.0
  %105 = vmatpush1.msra.mxu0 0.0
  %106 = vmatprep.subr.mxu0 0.0
  %107 = vmatpush1.msra.mxu0 0.0
  %108 = vmatprep.subr.mxu0 0.0
  %109 = vmatpush1.msra.mxu0 0.0
  %110 = vmatprep.subr.mxu0 0.0
  %111 = vmatpush1.msra.mxu0 0.0
  %112 = vmatprep.subr.mxu0 0.0
  %113 = vmatpush1.msra.mxu0 0.0
  %114 = vmatprep.subr.mxu0 0.0
  %115 = vmatpush1.msra.mxu0 0.0
  %116 = vmatprep.subr.mxu0 0.0
  %117 = vmatpush1.msra.mxu0 0.0
  %118 = vmatprep.subr.mxu0 0.0
  %119 = vmatpush1.msra.mxu0 0.0
  %120 = vmatprep.subr.mxu0 0.0
  %121 = vmatpush1.msra.mxu0 0.0
  %122 = vmatprep.subr.mxu0 0.0
  %123 = vmatpush1.msra.mxu0 0.0
  %124 = vmatprep.subr.mxu0 0.0
  %125 = vmatpush1.msra.mxu0 0.0
  %126 = vmatprep.subr.mxu0 0.0
  %127 = vmatpush1.msra.mxu0 0.0
  %128 = vmatprep.subr.mxu0 0.0
  %129 = vmatpush1.msra.mxu0 0.0
  %130 = vmatprep.subr.mxu0 0.0
  %131 = vmatpush1.msra.mxu0 0.0
  %132 = vmatprep.subr.mxu0 0.0
  %133 = vmatpush1.msra.mxu0 0.0
  %134 = vmatprep.subr.mxu0 0.0
  %135 = vmatpush1.msra.mxu0 0.0
  %136 = vmatprep.subr.mxu0 0.0
  %137 = vmatpush1.msra.mxu0 0.0
  %138 = vmatprep.subr.mxu0 0.0
  %139 = vmatpush1.msra.mxu0 0.0
  %140 = vmatprep.subr.mxu0 0.0
  %141 = vmatpush1.msra.mxu0 0.0
  %142 = vmatprep.subr.mxu0 0.0
  %143 = vmatpush1.msra.mxu0 0.0
  %144 = vmatprep.subr.mxu0 0.0
  %145 = vmatpush1.msra.mxu0 0.0
  %146 = vmatprep.subr.mxu0 0.0
  %147 = vmatpush1.msra.mxu0 0.0
  %148 = vmatprep.mubr.f32.mxu0 0.0
  %149 = vmatmul.mubr.f32.gmra.mrb[0].mxu0 %v78
  %v150 = vpop.f32.mrb[0].mxu0
  %v151 = vadd.f32 0.0, %v150
  %v152 = vpop.f32.mrb[0].mxu0
  %v153 = vadd.f32 0.0, %v152
  %154 = vdwg.mxu0
  %155 = vrot.lane.b32.xlu0 %v151, 127
  %v156 = vpop.permute.xlu0 %155
  %157 = vrot.lane.b32.xlu0 %v153, 127
  %v158 = vpop.permute.xlu0 %157
  %v159 = vsel %vm32, %v156, %v158
  %v160 = vsel %vm32, %v158, %v156
  %161 = vrot.lane.b32.xlu0 %v151, 112
  %v162 = vpop.permute.xlu0 %161
  %163 = vrot.lane.b32.xlu0 %v153, 112
  %v164 = vpop.permute.xlu0 %163
  %v165 = vsel %vm39, %v162, %v164
  %v166 = vsel %vm39, %v164, %v162
  %167 = vrot.lane.b32.xlu0 %v151, 111
  %v168 = vpop.permute.xlu0 %167
  %169 = vrot.lane.b32.xlu0 %v153, 111
  %v170 = vpop.permute.xlu0 %169
  %v171 = vsel %vm46, %v168, %v170
  %v172 = vsel %vm46, %v170, %v168
  %v175 = vrot.slane %v159, 4
  %v176 = vrot.slane %v160, 4
  %v181 = vrot.slane %v171, 4
  %v182 = vrot.slane %v172, 4
  %v185 = vsel %vm70, %v151, %v175
  %v186 = vsel %vm70, %v153, %v176
  %v187 = vsel %vm70, %v165, %v181
  %v188 = vsel %vm70, %v166, %v182
  %vm189 = vcmask 138240
  %v191 = vsel %vm189, %v12, 0
  %193 = vmatprep.subr.mxu0 %v186
  %194 = vmatpush1.msra.mxu0 %v185
  %195 = vmatprep.subr.mxu0 %v188
  %196 = vmatpush1.msra.mxu0 %v187
  %197 = vmatprep.subr.mxu0 %v82
  %198 = vmatpush1.msra.mxu0 %v82
  %199 = vmatprep.subr.mxu0 0.0
  %200 = vmatpush1.msra.mxu0 0.0
  %201 = vmatprep.subr.mxu0 0.0
  %202 = vmatpush1.msra.mxu0 0.0
  %203 = vmatprep.subr.mxu0 0.0
  %204 = vmatpush1.msra.mxu0 0.0
  %205 = vmatprep.subr.mxu0 0.0
  %206 = vmatpush1.msra.mxu0 0.0
  %207 = vmatprep.subr.mxu0 0.0
  %208 = vmatpush1.msra.mxu0 0.0
  %209 = vmatprep.subr.mxu0 0.0
  %210 = vmatpush1.msra.mxu0 0.0
  %211 = vmatprep.subr.mxu0 0.0
  %212 = vmatpush1.msra.mxu0 0.0
  %213 = vmatprep.subr.mxu0 0.0
  %214 = vmatpush1.msra.mxu0 0.0
  %215 = vmatprep.subr.mxu0 0.0
  %216 = vmatpush1.msra.mxu0 0.0
  %217 = vmatprep.subr.mxu0 0.0
  %218 = vmatpush1.msra.mxu0 0.0
  %219 = vmatprep.subr.mxu0 0.0
  %220 = vmatpush1.msra.mxu0 0.0
  %221 = vmatprep.subr.mxu0 0.0
  %222 = vmatpush1.msra.mxu0 0.0
  %223 = vmatprep.subr.mxu0 0.0
  %224 = vmatpush1.msra.mxu0 0.0
  %225 = vmatprep.subr.mxu0 0.0
  %226 = vmatpush1.msra.mxu0 0.0
  %227 = vmatprep.subr.mxu0 0.0
  %228 = vmatpush1.msra.mxu0 0.0
  %229 = vmatprep.subr.mxu0 0.0
  %230 = vmatpush1.msra.mxu0 0.0
  %231 = vmatprep.subr.mxu0 0.0
  %232 = vmatpush1.msra.mxu0 0.0
  %233 = vmatprep.subr.mxu0 0.0
  %234 = vmatpush1.msra.mxu0 0.0
  %235 = vmatprep.subr.mxu0 0.0
  %236 = vmatpush1.msra.mxu0 0.0
  %237 = vmatprep.subr.mxu0 0.0
  %238 = vmatpush1.msra.mxu0 0.0
  %239 = vmatprep.subr.mxu0 0.0
  %240 = vmatpush1.msra.mxu0 0.0
  %241 = vmatprep.subr.mxu0 0.0
  %242 = vmatpush1.msra.mxu0 0.0
  %243 = vmatprep.subr.mxu0 0.0
  %244 = vmatpush1.msra.mxu0 0.0
  %245 = vmatprep.subr.mxu0 0.0
  %246 = vmatpush1.msra.mxu0 0.0
  %247 = vmatprep.subr.mxu0 0.0
  %248 = vmatpush1.msra.mxu0 0.0
  %249 = vmatprep.subr.mxu0 0.0
  %250 = vmatpush1.msra.mxu0 0.0
  %251 = vmatprep.subr.mxu0 0.0
  %252 = vmatpush1.msra.mxu0 0.0
  %253 = vmatprep.subr.mxu0 0.0
  %254 = vmatpush1.msra.mxu0 0.0
  %255 = vmatprep.subr.mxu0 0.0
  %256 = vmatpush1.msra.mxu0 0.0
  %257 = vmatprep.mubr.f32.mxu0 0.0
  %258 = vmatmul.mubr.f32.gmra.mrb[0].mxu0 %v191
  %v259 = vpop.f32.mrb[0].mxu0
  %v260 = vadd.f32 0.0, %v259
  %v261 = vpop.f32.mrb[0].mxu0
  %v262 = vadd.f32 0.0, %v261
  %263 = vdwg.mxu0
  %264 = vrot.lane.b32.xlu0 %v260, 127
  %v265 = vpop.permute.xlu0 %264
  %266 = vrot.lane.b32.xlu0 %v262, 127
  %v267 = vpop.permute.xlu0 %266
  %v268 = vsel %vm32, %v265, %v267
  %v269 = vsel %vm32, %v267, %v265
  %270 = vrot.lane.b32.xlu0 %v260, 112
  %v271 = vpop.permute.xlu0 %270
  %272 = vrot.lane.b32.xlu0 %v262, 112
  %v273 = vpop.permute.xlu0 %272
  %v274 = vsel %vm39, %v271, %v273
  %v275 = vsel %vm39, %v273, %v271
  %276 = vrot.lane.b32.xlu0 %v260, 111
  %v277 = vpop.permute.xlu0 %276
  %278 = vrot.lane.b32.xlu0 %v262, 111
  %v279 = vpop.permute.xlu0 %278
  %v280 = vsel %vm46, %v277, %v279
  %v281 = vsel %vm46, %v279, %v277
  %vm282 = vcmask 269312
  %v284 = vsel %vm282, %v13, 0
  %286 = vmatprep.subr.mxu0 %v262
  %287 = vmatpush1.msra.mxu0 %v260
  %288 = vmatprep.subr.mxu0 %v269
  %289 = vmatpush1.msra.mxu0 %v268
  %290 = vmatprep.subr.mxu0 %v275
  %291 = vmatpush1.msra.mxu0 %v274
  %292 = vmatprep.subr.mxu0 %v281
  %293 = vmatpush1.msra.mxu0 %v280
  %294 = vmatprep.subr.mxu0 %v82
  %295 = vmatpush1.msra.mxu0 %v82
  %296 = vmatprep.subr.mxu0 0.0
  %297 = vmatpush1.msra.mxu0 0.0
  %298 = vmatprep.subr.mxu0 0.0
  %299 = vmatpush1.msra.mxu0 0.0
  %300 = vmatprep.subr.mxu0 0.0
  %301 = vmatpush1.msra.mxu0 0.0
  %302 = vmatprep.subr.mxu0 0.0
  %303 = vmatpush1.msra.mxu0 0.0
  %304 = vmatprep.subr.mxu0 0.0
  %305 = vmatpush1.msra.mxu0 0.0
  %306 = vmatprep.subr.mxu0 0.0
  %307 = vmatpush1.msra.mxu0 0.0
  %308 = vmatprep.subr.mxu0 0.0
  %309 = vmatpush1.msra.mxu0 0.0
  %310 = vmatprep.subr.mxu0 0.0
  %311 = vmatpush1.msra.mxu0 0.0
  %312 = vmatprep.subr.mxu0 0.0
  %313 = vmatpush1.msra.mxu0 0.0
  %314 = vmatprep.subr.mxu0 0.0
  %315 = vmatpush1.msra.mxu0 0.0
  %316 = vmatprep.subr.mxu0 0.0
  %317 = vmatpush1.msra.mxu0 0.0
  %318 = vmatprep.subr.mxu0 0.0
  %319 = vmatpush1.msra.mxu0 0.0
  %320 = vmatprep.subr.mxu0 0.0
  %321 = vmatpush1.msra.mxu0 0.0
  %322 = vmatprep.subr.mxu0 0.0
  %323 = vmatpush1.msra.mxu0 0.0
  %324 = vmatprep.subr.mxu0 0.0
  %325 = vmatpush1.msra.mxu0 0.0
  %326 = vmatprep.subr.mxu0 0.0
  %327 = vmatpush1.msra.mxu0 0.0
  %328 = vmatprep.subr.mxu0 0.0
  %329 = vmatpush1.msra.mxu0 0.0
  %330 = vmatprep.subr.mxu0 0.0
  %331 = vmatpush1.msra.mxu0 0.0
  %332 = vmatprep.subr.mxu0 0.0
  %333 = vmatpush1.msra.mxu0 0.0
  %334 = vmatprep.subr.mxu0 0.0
  %335 = vmatpush1.msra.mxu0 0.0
  %336 = vmatprep.subr.mxu0 0.0
  %337 = vmatpush1.msra.mxu0 0.0
  %338 = vmatprep.subr.mxu0 0.0
  %339 = vmatpush1.msra.mxu0 0.0
  %340 = vmatprep.subr.mxu0 0.0
  %341 = vmatpush1.msra.mxu0 0.0
  %342 = vmatprep.subr.mxu0 0.0
  %343 = vmatpush1.msra.mxu0 0.0
  %344 = vmatprep.subr.mxu0 0.0
  %345 = vmatpush1.msra.mxu0 0.0
  %346 = vmatprep.subr.mxu0 0.0
  %347 = vmatpush1.msra.mxu0 0.0
  %348 = vmatprep.subr.mxu0 0.0
  %349 = vmatpush1.msra.mxu0 0.0
  %350 = vmatprep.mubr.f32.mxu0 0.0
  %351 = vmatmul.mubr.f32.gmra.mrb[0].mxu0 %v284
  %v352 = vpop.f32.mrb[0].mxu0
  %v353 = vadd.f32 0.0, %v352
  %v354 = vpop.f32.mrb[0].mxu0
  %v355 = vadd.f32 0.0, %v354
  %356 = vdwg.mxu0
  %357 = vst [vmem:[%s2] sm:$0xff] %v353
  %358 = vst [vmem:[%s2 + $0x8] sm:$0xff] %v355
  %s359 = scalar_lea.vmem %s0, 4
  %v360 = vld [vmem:[%s359] sm:$0xf]
  %v363 = vunpack.c.l.s4 1983009808
  %v364 = vunpack.c.0.s8 %v363
  %v365 = vlaneseq
  %v366 = vshrl.u32 %v365, 7
  %v367 = vsub.s32 %v364, %v366
  %v368 = vrot.slane %v360, %v367
  %v369 = vcombine.high %v368, %v368
  %372 = vrot.lane.b32.xlu0 %v368, 127
  %v373 = vpop.permute.xlu0 %372
  %374 = vrot.lane.b32.xlu0 %v369, 127
  %v375 = vpop.permute.xlu0 %374
  %v376 = vsel %vm32, %v373, %v375
  %v377 = vsel %vm32, %v375, %v373
  %378 = vrot.lane.b32.xlu0 %v368, 112
  %v379 = vpop.permute.xlu0 %378
  %380 = vrot.lane.b32.xlu0 %v369, 112
  %v381 = vpop.permute.xlu0 %380
  %v382 = vsel %vm39, %v379, %v381
  %v383 = vsel %vm39, %v381, %v379
  %384 = vrot.lane.b32.xlu0 %v368, 111
  %v385 = vpop.permute.xlu0 %384
  %386 = vrot.lane.b32.xlu0 %v369, 111
  %v387 = vpop.permute.xlu0 %386
  %v388 = vsel %vm46, %v385, %v387
  %v389 = vsel %vm46, %v387, %v385
  %v392 = vrot.slane %v376, 6
  %v393 = vrot.slane %v377, 6
  %v398 = vrot.slane %v382, 4
  %v399 = vrot.slane %v383, 4
  %v404 = vrot.slane %v388, 2
  %v405 = vrot.slane %v389, 2
  %v408 = vsel %vm67, %v368, %v392
  %v409 = vsel %vm67, %v369, %v393
  %v410 = vsel %vm70, %v408, %v398
  %v411 = vsel %vm70, %v409, %v399
  %v412 = vsel %vm73, %v410, %v404
  %v413 = vsel %vm73, %v411, %v405
  %414 = vmatprep.subr.mxu0 %v413
  %415 = vmatpush1.msra.mxu0 %v412
  %416 = vmatprep.subr.mxu0 %v82
  %417 = vmatpush1.msra.mxu0 %v82
  %418 = vmatprep.subr.mxu0 0.0
  %419 = vmatpush1.msra.mxu0 0.0
  %420 = vmatprep.subr.mxu0 0.0
  %421 = vmatpush1.msra.mxu0 0.0
  %422 = vmatprep.subr.mxu0 0.0
  %423 = vmatpush1.msra.mxu0 0.0
  %424 = vmatprep.subr.mxu0 0.0
  %425 = vmatpush1.msra.mxu0 0.0
  %426 = vmatprep.subr.mxu0 0.0
  %427 = vmatpush1.msra.mxu0 0.0
  %428 = vmatprep.subr.mxu0 0.0
  %429 = vmatpush1.msra.mxu0 0.0
  %430 = vmatprep.subr.mxu0 0.0
  %431 = vmatpush1.msra.mxu0 0.0
  %432 = vmatprep.subr.mxu0 0.0
  %433 = vmatpush1.msra.mxu0 0.0
  %434 = vmatprep.subr.mxu0 0.0
  %435 = vmatpush1.msra.mxu0 0.0
  %436 = vmatprep.subr.mxu0 0.0
  %437 = vmatpush1.msra.mxu0 0.0
  %438 = vmatprep.subr.mxu0 0.0
  %439 = vmatpush1.msra.mxu0 0.0
  %440 = vmatprep.subr.mxu0 0.0
  %441 = vmatpush1.msra.mxu0 0.0
  %442 = vmatprep.subr.mxu0 0.0
  %443 = vmatpush1.msra.mxu0 0.0
  %444 = vmatprep.subr.mxu0 0.0
  %445 = vmatpush1.msra.mxu0 0.0
  %446 = vmatprep.subr.mxu0 0.0
  %447 = vmatpush1.msra.mxu0 0.0
  %448 = vmatprep.subr.mxu0 0.0
  %449 = vmatpush1.msra.mxu0 0.0
  %450 = vmatprep.subr.mxu0 0.0
  %451 = vmatpush1.msra.mxu0 0.0
  %452 = vmatprep.subr.mxu0 0.0
  %453 = vmatpush1.msra.mxu0 0.0
  %454 = vmatprep.subr.mxu0 0.0
  %455 = vmatpush1.msra.mxu0 0.0
  %456 = vmatprep.subr.mxu0 0.0
  %457 = vmatpush1.msra.mxu0 0.0
  %458 = vmatprep.subr.mxu0 0.0
  %459 = vmatpush1.msra.mxu0 0.0
  %460 = vmatprep.subr.mxu0 0.0
  %461 = vmatpush1.msra.mxu0 0.0
  %462 = vmatprep.subr.mxu0 0.0
  %463 = vmatpush1.msra.mxu0 0.0
  %464 = vmatprep.subr.mxu0 0.0
  %465 = vmatpush1.msra.mxu0 0.0
  %466 = vmatprep.subr.mxu0 0.0
  %467 = vmatpush1.msra.mxu0 0.0
  %468 = vmatprep.subr.mxu0 0.0
  %469 = vmatpush1.msra.mxu0 0.0
  %470 = vmatprep.subr.mxu0 0.0
  %471 = vmatpush1.msra.mxu0 0.0
  %472 = vmatprep.subr.mxu0 0.0
  %473 = vmatpush1.msra.mxu0 0.0
  %474 = vmatprep.subr.mxu0 0.0
  %475 = vmatpush1.msra.mxu0 0.0
  %476 = vmatprep.subr.mxu0 0.0
  %477 = vmatpush1.msra.mxu0 0.0
  %478 = vmatprep.mubr.f32.mxu0 0.0
  %479 = vmatmul.mubr.f32.gmra.mrb[0].mxu0 %v78
  %v480 = vpop.f32.mrb[0].mxu0
  %v481 = vadd.f32 0.0, %v480
  %v482 = vpop.f32.mrb[0].mxu0
  %v483 = vadd.f32 0.0, %v482
  %484 = vdwg.mxu0
  %485 = vrot.lane.b32.xlu0 %v481, 127
  %v486 = vpop.permute.xlu0 %485
  %487 = vrot.lane.b32.xlu0 %v483, 127
  %v488 = vpop.permute.xlu0 %487
  %v489 = vsel %vm32, %v486, %v488
  %v490 = vsel %vm32, %v488, %v486
  %491 = vrot.lane.b32.xlu0 %v481, 112
  %v492 = vpop.permute.xlu0 %491
  %493 = vrot.lane.b32.xlu0 %v483, 112
  %v494 = vpop.permute.xlu0 %493
  %v495 = vsel %vm39, %v492, %v494
  %v496 = vsel %vm39, %v494, %v492
  %497 = vrot.lane.b32.xlu0 %v481, 111
  %v498 = vpop.permute.xlu0 %497
  %499 = vrot.lane.b32.xlu0 %v483, 111
  %v500 = vpop.permute.xlu0 %499
  %v501 = vsel %vm46, %v498, %v500
  %v502 = vsel %vm46, %v500, %v498
  %v505 = vrot.slane %v489, 4
  %v506 = vrot.slane %v490, 4
  %v511 = vrot.slane %v501, 4
  %v512 = vrot.slane %v502, 4
  %v515 = vsel %vm70, %v481, %v505
  %v516 = vsel %vm70, %v483, %v506
  %v517 = vsel %vm70, %v495, %v511
  %v518 = vsel %vm70, %v496, %v512
  %519 = vmatprep.subr.mxu0 %v516
  %520 = vmatpush1.msra.mxu0 %v515
  %521 = vmatprep.subr.mxu0 %v518
  %522 = vmatpush1.msra.mxu0 %v517
  %523 = vmatprep.subr.mxu0 %v82
  %524 = vmatpush1.msra.mxu0 %v82
  %525 = vmatprep.subr.mxu0 0.0
  %526 = vmatpush1.msra.mxu0 0.0
  %527 = vmatprep.subr.mxu0 0.0
  %528 = vmatpush1.msra.mxu0 0.0
  %529 = vmatprep.subr.mxu0 0.0
  %530 = vmatpush1.msra.mxu0 0.0
  %531 = vmatprep.subr.mxu0 0.0
  %532 = vmatpush1.msra.mxu0 0.0
  %533 = vmatprep.subr.mxu0 0.0
  %534 = vmatpush1.msra.mxu0 0.0
  %535 = vmatprep.subr.mxu0 0.0
  %536 = vmatpush1.msra.mxu0 0.0
  %537 = vmatprep.subr.mxu0 0.0
  %538 = vmatpush1.msra.mxu0 0.0
  %539 = vmatprep.subr.mxu0 0.0
  %540 = vmatpush1.msra.mxu0 0.0
  %541 = vmatprep.subr.mxu0 0.0
  %542 = vmatpush1.msra.mxu0 0.0
  %543 = vmatprep.subr.mxu0 0.0
  %544 = vmatpush1.msra.mxu0 0.0
  %545 = vmatprep.subr.mxu0 0.0
  %546 = vmatpush1.msra.mxu0 0.0
  %547 = vmatprep.subr.mxu0 0.0
  %548 = vmatpush1.msra.mxu0 0.0
  %549 = vmatprep.subr.mxu0 0.0
  %550 = vmatpush1.msra.mxu0 0.0
  %551 = vmatprep.subr.mxu0 0.0
  %552 = vmatpush1.msra.mxu0 0.0
  %553 = vmatprep.subr.mxu0 0.0
  %554 = vmatpush1.msra.mxu0 0.0
  %555 = vmatprep.subr.mxu0 0.0
  %556 = vmatpush1.msra.mxu0 0.0
  %557 = vmatprep.subr.mxu0 0.0
  %558 = vmatpush1.msra.mxu0 0.0
  %559 = vmatprep.subr.mxu0 0.0
  %560 = vmatpush1.msra.mxu0 0.0
  %561 = vmatprep.subr.mxu0 0.0
  %562 = vmatpush1.msra.mxu0 0.0
  %563 = vmatprep.subr.mxu0 0.0
  %564 = vmatpush1.msra.mxu0 0.0
  %565 = vmatprep.subr.mxu0 0.0
  %566 = vmatpush1.msra.mxu0 0.0
  %567 = vmatprep.subr.mxu0 0.0
  %568 = vmatpush1.msra.mxu0 0.0
  %569 = vmatprep.subr.mxu0 0.0
  %570 = vmatpush1.msra.mxu0 0.0
  %571 = vmatprep.subr.mxu0 0.0
  %572 = vmatpush1.msra.mxu0 0.0
  %573 = vmatprep.subr.mxu0 0.0
  %574 = vmatpush1.msra.mxu0 0.0
  %575 = vmatprep.subr.mxu0 0.0
  %576 = vmatpush1.msra.mxu0 0.0
  %577 = vmatprep.subr.mxu0 0.0
  %578 = vmatpush1.msra.mxu0 0.0
  %579 = vmatprep.subr.mxu0 0.0
  %580 = vmatpush1.msra.mxu0 0.0
  %581 = vmatprep.subr.mxu0 0.0
  %582 = vmatpush1.msra.mxu0 0.0
  %583 = vmatprep.mubr.f32.mxu0 0.0
  %584 = vmatmul.mubr.f32.gmra.mrb[0].mxu0 %v191
  %v585 = vpop.f32.mrb[0].mxu0
  %v586 = vadd.f32 0.0, %v585
  %v587 = vpop.f32.mrb[0].mxu0
  %v588 = vadd.f32 0.0, %v587
  %589 = vdwg.mxu0
  %590 = vrot.lane.b32.xlu0 %v586, 127
  %v591 = vpop.permute.xlu0 %590
  %592 = vrot.lane.b32.xlu0 %v588, 127
  %v593 = vpop.permute.xlu0 %592
  %v594 = vsel %vm32, %v591, %v593
  %v595 = vsel %vm32, %v593, %v591
  %596 = vrot.lane.b32.xlu0 %v586, 112
  %v597 = vpop.permute.xlu0 %596
  %598 = vrot.lane.b32.xlu0 %v588, 112
  %v599 = vpop.permute.xlu0 %598
  %v600 = vsel %vm39, %v597, %v599
  %v601 = vsel %vm39, %v599, %v597
  %602 = vrot.lane.b32.xlu0 %v586, 111
  %v603 = vpop.permute.xlu0 %602
  %604 = vrot.lane.b32.xlu0 %v588, 111
  %v605 = vpop.permute.xlu0 %604
  %v606 = vsel %vm46, %v603, %v605
  %v607 = vsel %vm46, %v605, %v603
  %608 = vmatprep.subr.mxu0 %v588
  %609 = vmatpush1.msra.mxu0 %v586
  %610 = vmatprep.subr.mxu0 %v595
  %611 = vmatpush1.msra.mxu0 %v594
  %612 = vmatprep.subr.mxu0 %v601
  %613 = vmatpush1.msra.mxu0 %v600
  %614 = vmatprep.subr.mxu0 %v607
  %615 = vmatpush1.msra.mxu0 %v606
  %616 = vmatprep.subr.mxu0 %v82
  %617 = vmatpush1.msra.mxu0 %v82
  %618 = vmatprep.subr.mxu0 0.0
  %619 = vmatpush1.msra.mxu0 0.0
  %620 = vmatprep.subr.mxu0 0.0
  %621 = vmatpush1.msra.mxu0 0.0
  %622 = vmatprep.subr.mxu0 0.0
  %623 = vmatpush1.msra.mxu0 0.0
  %624 = vmatprep.subr.mxu0 0.0
  %625 = vmatpush1.msra.mxu0 0.0
  %626 = vmatprep.subr.mxu0 0.0
  %627 = vmatpush1.msra.mxu0 0.0
  %628 = vmatprep.subr.mxu0 0.0
  %629 = vmatpush1.msra.mxu0 0.0
  %630 = vmatprep.subr.mxu0 0.0
  %631 = vmatpush1.msra.mxu0 0.0
  %632 = vmatprep.subr.mxu0 0.0
  %633 = vmatpush1.msra.mxu0 0.0
  %634 = vmatprep.subr.mxu0 0.0
  %635 = vmatpush1.msra.mxu0 0.0
  %636 = vmatprep.subr.mxu0 0.0
  %637 = vmatpush1.msra.mxu0 0.0
  %638 = vmatprep.subr.mxu0 0.0
  %639 = vmatpush1.msra.mxu0 0.0
  %640 = vmatprep.subr.mxu0 0.0
  %641 = vmatpush1.msra.mxu0 0.0
  %642 = vmatprep.subr.mxu0 0.0
  %643 = vmatpush1.msra.mxu0 0.0
  %644 = vmatprep.subr.mxu0 0.0
  %645 = vmatpush1.msra.mxu0 0.0
  %646 = vmatprep.subr.mxu0 0.0
  %647 = vmatpush1.msra.mxu0 0.0
  %648 = vmatprep.subr.mxu0 0.0
  %649 = vmatpush1.msra.mxu0 0.0
  %650 = vmatprep.subr.mxu0 0.0
  %651 = vmatpush1.msra.mxu0 0.0
  %652 = vmatprep.subr.mxu0 0.0
  %653 = vmatpush1.msra.mxu0 0.0
  %654 = vmatprep.subr.mxu0 0.0
  %655 = vmatpush1.msra.mxu0 0.0
  %656 = vmatprep.subr.mxu0 0.0
  %657 = vmatpush1.msra.mxu0 0.0
  %658 = vmatprep.subr.mxu0 0.0
  %659 = vmatpush1.msra.mxu0 0.0
  %660 = vmatprep.subr.mxu0 0.0
  %661 = vmatpush1.msra.mxu0 0.0
  %662 = vmatprep.subr.mxu0 0.0
  %663 = vmatpush1.msra.mxu0 0.0
  %664 = vmatprep.subr.mxu0 0.0
  %665 = vmatpush1.msra.mxu0 0.0
  %666 = vmatprep.subr.mxu0 0.0
  %667 = vmatpush1.msra.mxu0 0.0
  %668 = vmatprep.subr.mxu0 0.0
  %669 = vmatpush1.msra.mxu0 0.0
  %670 = vmatprep.subr.mxu0 0.0
  %671 = vmatpush1.msra.mxu0 0.0
  %672 = vmatprep.mubr.f32.mxu0 0.0
  %673 = vmatmul.mubr.f32.gmra.mrb[0].mxu0 %v284
  %v674 = vpop.f32.mrb[0].mxu0
  %v675 = vadd.f32 0.0, %v674
  %v676 = vpop.f32.mrb[0].mxu0
  %v677 = vadd.f32 0.0, %v676
  %678 = vdwg.mxu0
  %s679 = scalar_lea.vmem %s2, 16
  %680 = vst [vmem:[%s679] sm:$0xff] %v675
  %681 = vst [vmem:[%s679 + $0x8] sm:$0xff] %v677
  // Predicated region
  $region10: #{net_conv2d_forward.1} parent=0 // pred_check
    _
  $region11: #{net_conv2d_forward.1} parent=0 // pred_check_branch
    %683 = sbr.rel (0) target = $region13
  $region12: #{net_conv2d_forward.1} parent=0 // pred_region
    _
  $region13: #{net_conv2d_forward.1} parent=0 // pred_fallthru
    _
  // Predicated region
  $region14: #{net_conv2d_forward.1} parent=0 // pred_check
    _
  $region15: #{net_conv2d_forward.1} parent=0 // pred_check_branch
    %685 = sbr.rel (0) target = $region17
  $region16: #{net_conv2d_forward.1} parent=0 // pred_region
    _
  $region17: #{net_conv2d_forward.1} parent=0 // pred_fallthru
    _

</llo_original>
